<compile_context>
chip_gen: v6e
topology: v6e:2x2x1
jax: 0.10.0
libtpu: 0.0.40
codegen_flags: <defaults>
</compile_context>

<pallas_src>
import jax
import jax.numpy as jnp
from jax.experimental import pallas as pl
from jax.experimental.pallas import tpu as pltpu

# ------------------------ small, module-consistent shapes -------------------------
B = 2          # batch
N = 16         # sequence (num patches)
D = 128        # d_model      (1152 in the real model)
HM = 256       # hidden_dim   (4304 in the real model)

GELU_C = 0.7978845608028654  # sqrt(2/pi)


# --------------------------------- fused kernel -----------------------------------
def _siglip_mlp_kernel(x_ref, w1_ref, b1_ref, w2_ref, b2_ref, o_ref,
                       g_ref, acc_ref):
    # x:  (tile_m, D)   f32   (resident across the HM axis)
    # w1: (D, t_hm)     bf16  (streamed HM chunk)
    # b1: (1, t_hm)     f32
    # w2: (t_hm, D)     bf16  (streamed HM chunk)
    # b2: (1, D)        f32
    # o:  (tile_m, D)   f32   (resident; written only at the last HM chunk)
    # g:  (tile_m, D)   bf16  scratch — cached gelu(x)
    # acc:(tile_m, D)   f32   scratch — fc2 accumulator
    k = pl.program_id(1)

    @pl.when(k == 0)
    def _init():
        x = x_ref[...]
        # tanh-GELU in f32 on VPU/EUP (v5e-safe), applied BEFORE fc1 per spec.
        g = 0.5 * x * (1.0 + jnp.tanh(GELU_C * (x + 0.044715 * x * x * x)))
        g_ref[...] = g.astype(jnp.bfloat16)
        acc_ref[...] = jnp.zeros_like(acc_ref)

    # fc1 chunk: (tile_m, t_hm) = gelu(x) @ W1[:, chunk] + b1[chunk]
    h = (
        jnp.dot(g_ref[...], w1_ref[...], preferred_element_type=jnp.float32)
        + b1_ref[...]
    )

    # fc2 partial: accumulate (tile_m, D) in f32.
    acc_ref[...] += jnp.dot(h.astype(jnp.bfloat16), w2_ref[...],
                            preferred_element_type=jnp.float32)

    @pl.when(k == pl.num_programs(1) - 1)
    def _finalize():
        o_ref[...] = (acc_ref[...] + b2_ref[...]).astype(o_ref.dtype)


# ----------------------------------- wrapper ---------------------------------------
def siglip_mlp(x, w1, b1, w2, b2, *, tile_m=None, t_hm=None):
    """x: (B, N, D) f32.  w1: (D, HM), w2: (HM, D) — ideally pre-cast to bf16.
    b1: (HM,), b2: (D,) as in nn.Linear (reshaped internally)."""
    b, n, d = x.shape
    d_in, hm = w1.shape
    assert d_in == d and w2.shape == (hm, d)
    assert b1.shape[-1] == hm and b2.shape[-1] == d
    m = b * n

    if tile_m is None:
        tile_m = m if m <= 256 else 256          # fill the MXU M dimension
    assert m % tile_m == 0
    assert tile_m == m or tile_m % 8 == 0

    if t_hm is None:
        t_hm = hm if hm <= 512 else 512          # stream HM in ~512-wide chunks
    assert hm % t_hm == 0
    assert t_hm == hm or t_hm % 128 == 0

    # Weights should be stored in bf16 (cast once at init); only cast here as
    # a fallback so the wrapper still works with f32 params.
    w1b = w1 if w1.dtype == jnp.bfloat16 else w1.astype(jnp.bfloat16)
    w2b = w2 if w2.dtype == jnp.bfloat16 else w2.astype(jnp.bfloat16)

    x2 = x.reshape(m, d)
    b1r = b1.reshape(1, hm).astype(jnp.float32)
    b2r = b2.reshape(1, d).astype(jnp.float32)

    grid = (m // tile_m, hm // t_hm)             # HM (reduction) axis last

    out = pl.pallas_call(
        _siglip_mlp_kernel,
        out_shape=jax.ShapeDtypeStruct((m, d), jnp.float32),
        grid_spec=pltpu.PrefetchScalarGridSpec(
            num_scalar_prefetch=0,
            grid=grid,
            in_specs=[
                pl.BlockSpec((tile_m, d), lambda i, k: (i, 0)),   # x rows (resident over k)
                pl.BlockSpec((d, t_hm),   lambda i, k: (0, k)),   # W1 chunk (streamed)
                pl.BlockSpec((1, t_hm),   lambda i, k: (0, k)),   # b1 chunk
                pl.BlockSpec((t_hm, d),   lambda i, k: (k, 0)),   # W2 chunk (streamed)
                pl.BlockSpec((1, d),      lambda i, k: (0, 0)),   # b2 (resident)
            ],
            out_specs=pl.BlockSpec((tile_m, d), lambda i, k: (i, 0)),
            scratch_shapes=[
                pltpu.VMEM((tile_m, d), jnp.bfloat16),   # cached gelu(x) tile
                pltpu.VMEM((tile_m, d), jnp.float32),    # fc2 accumulator
            ],
        ),
        compiler_params=pltpu.CompilerParams(
            # Rows parallel (megacore only engages when there are >=2 row
            # tiles, i.e. each core gets a full MXU-sized tile of work);
            # HM axis is a reduction -> arbitrary.
            dimension_semantics=("parallel", "arbitrary"),
        ),
    )(x2, w1b, b1r, w2b, b2r)
    return out.reshape(b, n, d)


# ---------------------------------- reference ---------------------------------------
def ref_siglip_mlp(x, w1, b1, w2, b2):
    # Faithful f32 reference of the module: gelu_tanh -> fc1 -> fc2.
    g = 0.5 * x * (1.0 + jnp.tanh(GELU_C * (x + 0.044715 * x ** 3)))
    h = g @ w1 + b1
    return h @ w2 + b2


# ------------------------------------- main -----------------------------------------
if __name__ == "__main__":
    root = jax.random.PRNGKey(0)
    kx, k1, k2, k3, k4 = jax.random.split(root, 5)

    x = jax.random.normal(kx, (B, N, D), jnp.float32)
    w1_f32 = jax.random.normal(k1, (D, HM), jnp.float32) * (D ** -0.5)
    b1 = jax.random.normal(k2, (HM,), jnp.float32) * 0.02
    w2_f32 = jax.random.normal(k3, (HM, D), jnp.float32) * (HM ** -0.5)
    b2 = jax.random.normal(k4, (D,), jnp.float32) * 0.02

    # Cast weights to bf16 ONCE at init time (not per call).
    w1 = w1_f32.astype(jnp.bfloat16)
    w2 = w2_f32.astype(jnp.bfloat16)

    # t_hm=128 -> HM grid axis of 2: exercises the streamed-chunk accumulator
    # path (init / accumulate / finalize) even at toy shapes.
    out = jax.block_until_ready(siglip_mlp(x, w1, b1, w2, b2, t_hm=128))
    ref = jax.block_until_ready(ref_siglip_mlp(x, w1_f32, b1, w2_f32, b2))

    assert out.shape == (B, N, D)
    # Tolerance relaxed vs the f32 reference: MXU operands are bf16 and the
    # fc1 result is rounded f32->bf16 before fc2 (double rounding, documented);
    # accumulation stays f32.
    err = float(jnp.max(jnp.abs(out - ref)))
    assert jnp.allclose(out, ref, rtol=2e-2, atol=2e-2), err
    print("KERNEL_OK")
</pallas_src>

<mosaic_0001>
module attributes {stable_mosaic.version = 11 : i64} {
  func.func @_siglip_mlp_kernel(%arg0: i32, %arg1: i32, %arg2: memref<32x128xf32, #tpu.memory_space<vmem>>, %arg3: memref<128x128xbf16, #tpu.memory_space<vmem>>, %arg4: memref<1x128xf32, #tpu.memory_space<vmem>>, %arg5: memref<128x128xbf16, #tpu.memory_space<vmem>>, %arg6: memref<1x128xf32, #tpu.memory_space<vmem>>, %arg7: memref<32x128xf32, #tpu.memory_space<vmem>>, %arg8: memref<32x128xbf16, #tpu.memory_space<vmem>>, %arg9: memref<32x128xf32, #tpu.memory_space<vmem>>) attributes {dimension_semantics = [#tpu.dimension_semantics<parallel>, #tpu.dimension_semantics<arbitrary>], iteration_bounds = array<i64: 1, 2>, scalar_prefetch = 0 : i64, scratch_operands = 2 : i64, tpu.core_type = #tpu.core_type<tc>, window_params = [{transform_indices = @transform_0, window_bounds = array<i64: 32, 128>}, {transform_indices = @transform_1, window_bounds = array<i64: 128, 128>}, {transform_indices = @transform_2, window_bounds = array<i64: 1, 128>}, {transform_indices = @transform_3, window_bounds = array<i64: 128, 128>}, {pipeline_mode = #tpu.pipeline_mode<synchronous>, transform_indices = @transform_4, window_bounds = array<i64: 1, 128>}, {transform_indices = @transform_5, window_bounds = array<i64: 32, 128>}]} {
    %c0_i32 = arith.constant 0 : i32
    %0 = arith.cmpi eq, %arg1, %c0_i32 : i32
    %1 = arith.extui %0 : i1 to i32
    %c0_i32_0 = arith.constant 0 : i32
    %2 = arith.cmpi ne, %1, %c0_i32_0 : i32
    scf.if %2 {
      %c0_14 = arith.constant 0 : index
      %c0_15 = arith.constant 0 : index
      %18 = vector.load %arg2[%c0_14, %c0_15] : memref<32x128xf32, #tpu.memory_space<vmem>>, vector<32x128xf32>
      %cst_16 = arith.constant 5.000000e-01 : f32
      %19 = vector.broadcast %cst_16 : f32 to vector<32x128xf32>
      %20 = arith.mulf %19, %18 : vector<32x128xf32>
      %cst_17 = arith.constant 4.471500e-02 : f32
      %21 = vector.broadcast %cst_17 : f32 to vector<32x128xf32>
      %22 = arith.mulf %21, %18 : vector<32x128xf32>
      %23 = arith.mulf %22, %18 : vector<32x128xf32>
      %24 = arith.mulf %23, %18 : vector<32x128xf32>
      %25 = arith.addf %18, %24 : vector<32x128xf32>
      %cst_18 = arith.constant 0.797884583 : f32
      %26 = vector.broadcast %cst_18 : f32 to vector<32x128xf32>
      %27 = arith.mulf %26, %25 : vector<32x128xf32>
      %28 = math.tanh %27 : vector<32x128xf32>
      %cst_19 = arith.constant 1.000000e+00 : f32
      %29 = vector.broadcast %cst_19 : f32 to vector<32x128xf32>
      %30 = arith.addf %29, %28 : vector<32x128xf32>
      %31 = arith.mulf %20, %30 : vector<32x128xf32>
      %32 = arith.truncf %31 : vector<32x128xf32> to vector<32x128xbf16>
      %c0_20 = arith.constant 0 : index
      %c0_21 = arith.constant 0 : index
      %33 = vector.load %arg8[%c0_20, %c0_21] : memref<32x128xbf16, #tpu.memory_space<vmem>>, vector<32x128xbf16>
      tpu.vector_store %arg8[%c0_20, %c0_21], %32 {strides = array<i32>} : memref<32x128xbf16, #tpu.memory_space<vmem>>, vector<32x128xbf16>,
      %cst_22 = arith.constant 0.000000e+00 : f32
      %34 = vector.broadcast %cst_22 : f32 to vector<32x128xf32>
      %c0_23 = arith.constant 0 : index
      %c0_24 = arith.constant 0 : index
      %35 = vector.load %arg9[%c0_23, %c0_24] : memref<32x128xf32, #tpu.memory_space<vmem>>, vector<32x128xf32>
      tpu.vector_store %arg9[%c0_23, %c0_24], %34 {strides = array<i32>} : memref<32x128xf32, #tpu.memory_space<vmem>>, vector<32x128xf32>,
    } else {
    }
    %c0 = arith.constant 0 : index
    %c0_1 = arith.constant 0 : index
    %3 = vector.load %arg8[%c0, %c0_1] : memref<32x128xbf16, #tpu.memory_space<vmem>>, vector<32x128xbf16>
    %c0_2 = arith.constant 0 : index
    %c0_3 = arith.constant 0 : index
    %4 = vector.load %arg3[%c0_2, %c0_3] : memref<128x128xbf16, #tpu.memory_space<vmem>>, vector<128x128xbf16>
    %cst = arith.constant dense<0.000000e+00> : vector<32x128xf32>
    %5 = tpu.matmul %3, %4, %cst {dimension_numbers = #tpu.dot_dimension_numbers<[1], [0], [0], [1], [0, 0, 1, 1], [], []>} : vector<32x128xbf16>, vector<128x128xbf16>, vector<32x128xf32> -> vector<32x128xf32>
    %c0_4 = arith.constant 0 : index
    %c0_5 = arith.constant 0 : index
    %6 = vector.load %arg4[%c0_4, %c0_5] : memref<1x128xf32, #tpu.memory_space<vmem>>, vector<1x128xf32>
    %7 = vector.broadcast %6 : vector<1x128xf32> to vector<32x128xf32>
    %8 = arith.addf %5, %7 : vector<32x128xf32>
    %c0_6 = arith.constant 0 : index
    %c0_7 = arith.constant 0 : index
    %9 = vector.load %arg9[%c0_6, %c0_7] : memref<32x128xf32, #tpu.memory_space<vmem>>, vector<32x128xf32>
    %10 = arith.truncf %8 : vector<32x128xf32> to vector<32x128xbf16>
    %c0_8 = arith.constant 0 : index
    %c0_9 = arith.constant 0 : index
    %11 = vector.load %arg5[%c0_8, %c0_9] : memref<128x128xbf16, #tpu.memory_space<vmem>>, vector<128x128xbf16>
    %cst_10 = arith.constant dense<0.000000e+00> : vector<32x128xf32>
    %12 = tpu.matmul %10, %11, %cst_10 {dimension_numbers = #tpu.dot_dimension_numbers<[1], [0], [0], [1], [0, 0, 1, 1], [], []>} : vector<32x128xbf16>, vector<128x128xbf16>, vector<32x128xf32> -> vector<32x128xf32>
    %13 = arith.addf %9, %12 : vector<32x128xf32>
    %c0_11 = arith.constant 0 : index
    %c0_12 = arith.constant 0 : index
    %14 = vector.load %arg9[%c0_11, %c0_12] : memref<32x128xf32, #tpu.memory_space<vmem>>, vector<32x128xf32>
    tpu.vector_store %arg9[%c0_11, %c0_12], %13 {strides = array<i32>} : memref<32x128xf32, #tpu.memory_space<vmem>>, vector<32x128xf32>,
    %c1_i32 = arith.constant 1 : i32
    %15 = arith.cmpi eq, %arg1, %c1_i32 : i32
    %16 = arith.extui %15 : i1 to i32
    %c0_i32_13 = arith.constant 0 : i32
    %17 = arith.cmpi ne, %16, %c0_i32_13 : i32
    scf.if %17 {
      %c0_14 = arith.constant 0 : index
      %c0_15 = arith.constant 0 : index
      %18 = vector.load %arg9[%c0_14, %c0_15] : memref<32x128xf32, #tpu.memory_space<vmem>>, vector<32x128xf32>
      %c0_16 = arith.constant 0 : index
      %c0_17 = arith.constant 0 : index
      %19 = vector.load %arg6[%c0_16, %c0_17] : memref<1x128xf32, #tpu.memory_space<vmem>>, vector<1x128xf32>
      %20 = vector.broadcast %19 : vector<1x128xf32> to vector<32x128xf32>
      %21 = arith.addf %18, %20 : vector<32x128xf32>
      %c0_18 = arith.constant 0 : index
      %c0_19 = arith.constant 0 : index
      %22 = vector.load %arg7[%c0_18, %c0_19] : memref<32x128xf32, #tpu.memory_space<vmem>>, vector<32x128xf32>
      tpu.vector_store %arg7[%c0_18, %c0_19], %21 {strides = array<i32>} : memref<32x128xf32, #tpu.memory_space<vmem>>, vector<32x128xf32>,
    } else {
    }
    return
  }
  func.func @transform_0(%arg0: i32, %arg1: i32) -> (i32, i32) {
    %c0_i32 = arith.constant 0 : i32
    %c0_i32_0 = arith.constant 0 : i32
    return %arg0, %c0_i32 : i32, i32
  }
  func.func @transform_1(%arg0: i32, %arg1: i32) -> (i32, i32) {
    %c0_i32 = arith.constant 0 : i32
    %c0_i32_0 = arith.constant 0 : i32
    return %c0_i32, %arg1 : i32, i32
  }
  func.func @transform_2(%arg0: i32, %arg1: i32) -> (i32, i32) {
    %c0_i32 = arith.constant 0 : i32
    %c0_i32_0 = arith.constant 0 : i32
    return %c0_i32, %arg1 : i32, i32
  }
  func.func @transform_3(%arg0: i32, %arg1: i32) -> (i32, i32) {
    %c0_i32 = arith.constant 0 : i32
    %c0_i32_0 = arith.constant 0 : i32
    return %arg1, %c0_i32 : i32, i32
  }
  func.func @transform_4(%arg0: i32, %arg1: i32) -> (i32, i32) {
    %c0_i32 = arith.constant 0 : i32
    %c0_i32_0 = arith.constant 0 : i32
    %c0_i32_1 = arith.constant 0 : i32
    return %c0_i32, %c0_i32_0 : i32, i32
  }
  func.func @transform_5(%arg0: i32, %arg1: i32) -> (i32, i32) {
    %c0_i32 = arith.constant 0 : i32
    %c0_i32_0 = arith.constant 0 : i32
    return %arg0, %c0_i32 : i32, i32
  }
}

</mosaic_0001>

<llo_original>
// kernel: tpu_custom_call.1
$region0: #{tpu_custom_call.1}
  #allocation0 [shape = 'u32[]', space=smem, size = 0x4, offset = 0x4, fixed_abs, tag = 'smem constant byte address 0x4 - core index']
  #allocation1 [shape = 'u32[144,128]{1,0:T(1,128)}', space=vmem, size = 0x12000, scoped, tag = 'internal scratch']
  #allocation2 [shape = 'bf16[32,128]{1,0:T(8,128)(2,1)}', space=vmem, size = 0x2000, scoped, tag = 'scratch operand']
  #allocation3 [shape = 'f32[32,128]{1,0:T(8,128)}', space=vmem, size = 0x4000, scoped, tag = 'scratch operand']
  %s0 = inlined_call_operand.hbm [shape: f32[32,128], index: 0, kind: input, shape index: {}]
  %s1 = inlined_call_operand.hbm [shape: bf16[128,256], index: 1, kind: input, shape index: {}]
  %s2 = inlined_call_operand.vmem [shape: f32[1,256], index: 2, kind: input, shape index: {}]
  %s3 = inlined_call_operand.hbm [shape: bf16[256,128], index: 3, kind: input, shape index: {}]
  %s4 = inlined_call_operand.vmem [shape: f32[1,128], index: 4, kind: input, shape index: {}]
  %s5 = inlined_call_operand.hbm [shape: f32[32,128], index: 5, kind: output, shape index: {}]
  %s6 = sld [smem:[#allocation0]]
  $region73: #{tpu_custom_call.1} parent=0
    _
  %s8 = ssub.s32 1, %s6
  %s9 = scalar_select 0, %s8, %s6
  $region1: #{tpu_custom_call.1} parent=0
    #allocation4 [shape = 'u8[16384]{0}', space=vmem, size = 0x4000, scoped, tag = 'input window, operand 0, single buffered']
    #allocation5 [shape = 's32[2]{0}', space=sflag, size = 0x8, scoped, tag = 'scoped memory for tpu_custom_call.1']
    #allocation6 [shape = 's32[2]{0}', space=sflag, size = 0x8, scoped, tag = 'scoped memory for tpu_custom_call.1']
    #allocation7 [shape = 'u8[65536]{0}', space=vmem, size = 0x10000, scoped, tag = 'input window, operand 1']
    #allocation8 [shape = 's32[2]{0}', space=sflag, size = 0x8, scoped, tag = 'scoped memory for tpu_custom_call.1']
    #allocation9 [shape = 'u8[65536]{0}', space=vmem, size = 0x10000, scoped, tag = 'input window, operand 3']
    #allocation10 [shape = 'u8[16384]{0}', space=vmem, size = 0x4000, scoped, tag = 'output window, operand 0, single buffered']
    %10 = vsyncpa [#allocation5], 0
    %11 = vsyncpa [#allocation8], 0
    %s12 = scalar_lea.sflag [#allocation8], 1
    %13 = vsyncpa %s12, 0
    %14 = vsyncpa [#allocation6], 0
    loop: start=0, step=1, limit=4
    $region2: #{tpu_custom_call.1} parent=1 // loop_pre_header
      _
    $region3: #{tpu_custom_call.1} parent=1 // loop_header
      %s16 = sphi 0, %s20
      %p17 = scmp.ge.s32.totalorder %s16, 4
      %s23 = sphi 0, %s35
      %s24 = sphi 0, %s31
      %s25 = sphi 0, %s23
      %s26 = sphi 0, %s24
      %s27 = sphi 0, %s25
      %s28 = sphi 0, %s26
      %s38 = sphi 0, %s40
      %s41 = sphi 0, %s38
      %s42 = sphi 0, %s41
      %s58 = sphi 0, %s42
      %s64 = sphi 0, %s66
      %s67 = sphi 0, %s64
      %s68 = sphi 0, %s67
      %s84 = sphi 0, %s68
      %s90 = sphi 0, %s92
      %s93 = sphi 0, %s90
      %s94 = sphi 0, %s93
      %s110 = sphi 0, %s94
      %s116 = sphi 0, %s118
      %s119 = sphi 0, %s116
      %s120 = sphi 0, %s119
      %s136 = sphi 0, %s120
      %s140 = sphi 0, %s140
      %s142 = sphi 0, %s140
      %s143 = sphi 0, %s142
      %s157 = sphi 0, %s143
      %s163 = sphi 0, %s165
      %s166 = sphi 0, %s163
      %s167 = sphi 0, %s166
      %s183 = sphi 0, %s167
    $region4: #{tpu_custom_call.1} parent=1 // loop_header_branch
      %19 = sbr.rel (%p17) target = $region8
    $region5: #{tpu_custom_call.1} parent=1 // loop_body
      %s21 = ssub.s32 %s16, 1
      %s22 = ssub.s32 %s16, 2
      %s29 = sadd.s32 1, %s24
      %p30 = scmp.ge.s32.totalorder %s29, 2
      %s31 = scalar_select %p30, 0, %s29
      %s32 = sadd.s32 1, %s23
      %s33 = scalar_select %p30, %s32, %s23
      %p34 = scmp.ge.s32.totalorder %s33, 1
      %s35 = scalar_select %p34, 0, %s33
      %s36 = ssub.s32 %s23, %s35
      %p37 = scmp.eq.s32.totalorder %s36, 0
      %s39 = sadd.s32 %s38, 1
      %s40 = scalar_select %p37, %s38, %s39
      %p43 = pneg %p37
      %p44 = scmp.eq.s32.totalorder %s16, 1
      %p45 = por %p43, %p44
      %p46 = scmp.ne.s32.totalorder %s38, %s41
      %p47 = scmp.eq.s32.totalorder %s16, 0
      %p48 = por %p46, %p47
      %p49 = scmp.ne.s32.totalorder %s38, %s41
      %p50 = scmp.eq.s32.totalorder %s21, 1
      %p51 = por %p49, %p50
      %p52 = scmp.ne.s32.totalorder %s41, %s42
      %p53 = scmp.eq.s32.totalorder %s21, 0
      %p54 = por %p52, %p53
      %p55 = scmp.ne.s32.totalorder %s41, %s42
      %p56 = scmp.eq.s32.totalorder %s22, 1
      %p57 = por %p55, %p56
      %p59 = scmp.ne.s32.totalorder %s42, %s58
      %p60 = scmp.eq.s32.totalorder %s22, 0
      %p61 = por %p59, %p60
      %s62 = ssub.s32 %s24, %s31
      %p63 = scmp.eq.s32.totalorder %s62, 0
      %s65 = sadd.s32 %s64, 1
      %s66 = scalar_select %p63, %s64, %s65
      %p69 = pneg %p63
      %p70 = scmp.eq.s32.totalorder %s16, 1
      %p71 = por %p69, %p70
      %p72 = scmp.ne.s32.totalorder %s64, %s67
      %p73 = scmp.eq.s32.totalorder %s16, 0
      %p74 = por %p72, %p73
      %p75 = scmp.ne.s32.totalorder %s64, %s67
      %p76 = scmp.eq.s32.totalorder %s21, 1
      %p77 = por %p75, %p76
      %p78 = scmp.ne.s32.totalorder %s67, %s68
      %p79 = scmp.eq.s32.totalorder %s21, 0
      %p80 = por %p78, %p79
      %p81 = scmp.ne.s32.totalorder %s67, %s68
      %p82 = scmp.eq.s32.totalorder %s22, 1
      %p83 = por %p81, %p82
      %p85 = scmp.ne.s32.totalorder %s68, %s84
      %p86 = scmp.eq.s32.totalorder %s22, 0
      %p87 = por %p85, %p86
      %s88 = ssub.s32 %s24, %s31
      %p89 = scmp.eq.s32.totalorder %s88, 0
      %s91 = sadd.s32 %s90, 1
      %s92 = scalar_select %p89, %s90, %s91
      %p95 = pneg %p89
      %p96 = scmp.eq.s32.totalorder %s16, 1
      %p97 = por %p95, %p96
      %p98 = scmp.ne.s32.totalorder %s90, %s93
      %p99 = scmp.eq.s32.totalorder %s16, 0
      %p100 = por %p98, %p99
      %p101 = scmp.ne.s32.totalorder %s90, %s93
      %p102 = scmp.eq.s32.totalorder %s21, 1
      %p103 = por %p101, %p102
      %p104 = scmp.ne.s32.totalorder %s93, %s94
      %p105 = scmp.eq.s32.totalorder %s21, 0
      %p106 = por %p104, %p105
      %p107 = scmp.ne.s32.totalorder %s93, %s94
      %p108 = scmp.eq.s32.totalorder %s22, 1
      %p109 = por %p107, %p108
      %p111 = scmp.ne.s32.totalorder %s94, %s110
      %p112 = scmp.eq.s32.totalorder %s22, 0
      %p113 = por %p111, %p112
      %s114 = ssub.s32 %s24, %s31
      %p115 = scmp.eq.s32.totalorder %s114, 0
      %s117 = sadd.s32 %s116, 1
      %s118 = scalar_select %p115, %s116, %s117
      %p121 = pneg %p115
      %p122 = scmp.eq.s32.totalorder %s16, 1
      %p123 = por %p121, %p122
      %p124 = scmp.ne.s32.totalorder %s116, %s119
      %p125 = scmp.eq.s32.totalorder %s16, 0
      %p126 = por %p124, %p125
      %p127 = scmp.ne.s32.totalorder %s116, %s119
      %p128 = scmp.eq.s32.totalorder %s21, 1
      %p129 = por %p127, %p128
      %p130 = scmp.ne.s32.totalorder %s119, %s120
      %p131 = scmp.eq.s32.totalorder %s21, 0
      %p132 = por %p130, %p131
      %p133 = scmp.ne.s32.totalorder %s119, %s120
      %p134 = scmp.eq.s32.totalorder %s22, 1
      %p135 = por %p133, %p134
      %p137 = scmp.ne.s32.totalorder %s120, %s136
      %p138 = scmp.eq.s32.totalorder %s22, 0
      %p139 = por %p137, %p138
      %s141 = sadd.s32 %s140, 1
      %p144 = scmp.eq.s32.totalorder %s16, 1
      %p145 = scmp.ne.s32.totalorder %s140, %s142
      %p146 = scmp.eq.s32.totalorder %s16, 0
      %p147 = por %p145, %p146
      %p148 = scmp.ne.s32.totalorder %s140, %s142
      %p149 = scmp.eq.s32.totalorder %s21, 1
      %p150 = por %p148, %p149
      %p151 = scmp.ne.s32.totalorder %s142, %s143
      %p152 = scmp.eq.s32.totalorder %s21, 0
      %p153 = por %p151, %p152
      %p154 = scmp.ne.s32.totalorder %s142, %s143
      %p155 = scmp.eq.s32.totalorder %s22, 1
      %p156 = por %p154, %p155
      %p158 = scmp.ne.s32.totalorder %s143, %s157
      %p159 = scmp.eq.s32.totalorder %s22, 0
      %p160 = por %p158, %p159
      %s161 = ssub.s32 %s23, %s35
      %p162 = scmp.eq.s32.totalorder %s161, 0
      %s164 = sadd.s32 %s163, 1
      %s165 = scalar_select %p162, %s163, %s164
      %p168 = pneg %p162
      %p169 = scmp.eq.s32.totalorder %s16, 1
      %p170 = por %p168, %p169
      %p171 = scmp.ne.s32.totalorder %s163, %s166
      %p172 = scmp.eq.s32.totalorder %s16, 0
      %p173 = por %p171, %p172
      %p174 = scmp.ne.s32.totalorder %s163, %s166
      %p175 = scmp.eq.s32.totalorder %s21, 1
      %p176 = por %p174, %p175
      %p177 = scmp.ne.s32.totalorder %s166, %s167
      %p178 = scmp.eq.s32.totalorder %s21, 0
      %p179 = por %p177, %p178
      %p180 = scmp.ne.s32.totalorder %s166, %s167
      %p181 = scmp.eq.s32.totalorder %s22, 1
      %p182 = por %p180, %p181
      %p184 = scmp.ne.s32.totalorder %s167, %s183
      %p185 = scmp.eq.s32.totalorder %s22, 0
      %p186 = por %p184, %p185
      %p187 = scmp.le.s32.totalorder 1, %s16
      %p188 = scmp.lt.s32.totalorder %s16, 3
      %p189 = pnand %p187, %p188
      %p190 = pneg %p189
      // Predicated region
      $region9: #{tpu_custom_call.1} parent=5 // pred_check
        _
      $region10: #{tpu_custom_call.1} parent=5 // pred_check_branch
        %192 = sbr.rel (%p189) target = $region12
      $region11: #{tpu_custom_call.1} parent=5 // pred_region
        %s193 = ssub.s32 %s16, 1
        // Predicated region
        $region13: #{tpu_custom_call.1} parent=11 // pred_check
          %p194 = pneg %p54
        $region14: #{tpu_custom_call.1} parent=11 // pred_check_branch
          %196 = sbr.rel (%p194) target = $region16
        $region15: #{tpu_custom_call.1} parent=11 // pred_region
          %s197 = smul.u32 4, %s25
          %s199 = ssub.s32 512, 512
          %200 = vsyncadd [#allocation5], %s199
          %s201 = smul.addr %s197, 128
          %s202 = scalar_lea.hbm %s0, %s201
          %s203 = sshll.u32 [#allocation4], 4
          %s204 = int_to_ptr.vmem [resolvable:$true] %s203
          %209 = dma.hbm_to_vmem [thread:$0]  %s202, 512, %s204, [#allocation5], 128, 128, 8
        $region16: #{tpu_custom_call.1} parent=11 // pred_fallthru
          _
        // Predicated region
        $region17: #{tpu_custom_call.1} parent=11 // pred_check
          %p210 = pneg %p153
        $region18: #{tpu_custom_call.1} parent=11 // pred_check_branch
          %212 = sbr.rel (%p210) target = $region20
        $region19: #{tpu_custom_call.1} parent=11 // pred_region
          _
        $region20: #{tpu_custom_call.1} parent=11 // pred_fallthru
          _
      $region12: #{tpu_custom_call.1} parent=5 // pred_fallthru
        _
      %p213 = scmp.lt.s32.totalorder %s16, 2
      // Predicated region
      $region21: #{tpu_custom_call.1} parent=5 // pred_check
        %p214 = pneg %p213
      $region22: #{tpu_custom_call.1} parent=5 // pred_check_branch
        %216 = sbr.rel (%p214) target = $region24
      $region23: #{tpu_custom_call.1} parent=5 // pred_region
        // Predicated region
        $region25: #{tpu_custom_call.1} parent=23 // pred_check
          %p217 = pneg %p74
        $region26: #{tpu_custom_call.1} parent=23 // pred_check_branch
          %219 = sbr.rel (%p217) target = $region28
        $region27: #{tpu_custom_call.1} parent=23 // pred_region
          %s220 = sand.u32 %s16, 1
          %s221 = scalar_lea.sflag [#allocation8], %s220
          %s222 = sand.u32 %s64, 1
          %s223 = smul.addr %s222, 64
          %s224 = scalar_lea.vmem [#allocation7], %s223
          %s226 = ssub.s32 1024, 1024
          %227 = vsyncadd %s221, %s226
          %s228 = smul.addr %s24, 64
          %s229 = scalar_lea.hbm %s1, %s228
          %s230 = sshll.u32 %s224, 4
          %s231 = int_to_ptr.vmem [resolvable:$true] %s230
          %236 = dma.hbm_to_vmem [thread:$0]  %s229, 1024, %s231, %s221, 128, 64, 4
        $region28: #{tpu_custom_call.1} parent=23 // pred_fallthru
          _
        // Predicated region
        $region29: #{tpu_custom_call.1} parent=23 // pred_check
          %p237 = pneg %p100
        $region30: #{tpu_custom_call.1} parent=23 // pred_check_branch
          %239 = sbr.rel (%p237) target = $region32
        $region31: #{tpu_custom_call.1} parent=23 // pred_region
          %p240 = scmp.lt.s32.totalorder %s24, 1
          %s241 = scalar_select %p240, %s24, 1
          %s242 = scalar_lea.vmem %s2, %s241
        $region32: #{tpu_custom_call.1} parent=23 // pred_fallthru
          _
        // Predicated region
        $region33: #{tpu_custom_call.1} parent=23 // pred_check
          %p243 = pneg %p126
        $region34: #{tpu_custom_call.1} parent=23 // pred_check_branch
          %245 = sbr.rel (%p243) target = $region36
        $region35: #{tpu_custom_call.1} parent=23 // pred_region
          %s246 = sand.u32 %s16, 1
          %s247 = scalar_lea.sflag [#allocation8], %s246
          %s248 = sand.u32 %s116, 1
          %s249 = smul.addr %s248, 64
          %s250 = scalar_lea.vmem [#allocation9], %s249
          %s251 = smul.u32 16, %s24
          %s253 = ssub.s32 1024, 1024
          %254 = vsyncadd %s247, %s253
          %s255 = smul.addr %s251, 64
          %s256 = scalar_lea.hbm %s3, %s255
          %s257 = sshll.u32 %s250, 4
          %s258 = int_to_ptr.vmem [resolvable:$true] %s257
          %263 = dma.hbm_to_vmem [thread:$0]  %s256, 1024, %s258, %s247, 64, 64, 4
        $region36: #{tpu_custom_call.1} parent=23 // pred_fallthru
          _
      $region24: #{tpu_custom_call.1} parent=5 // pred_fallthru
        _
      %p264 = scmp.le.s32.totalorder 1, %s16
      %p265 = scmp.lt.s32.totalorder %s16, 3
      %p266 = pnand %p264, %p265
      %p267 = pneg %p266
      // Predicated region
      $region37: #{tpu_custom_call.1} parent=5 // pred_check
        _
      $region38: #{tpu_custom_call.1} parent=5 // pred_check_branch
        %269 = sbr.rel (%p266) target = $region40
      $region39: #{tpu_custom_call.1} parent=5 // pred_region
        %s270 = ssub.s32 %s16, 1
        // Predicated region
        $region41: #{tpu_custom_call.1} parent=39 // pred_check
          %p271 = pneg %p54
        $region42: #{tpu_custom_call.1} parent=39 // pred_check_branch
          %273 = sbr.rel (%p271) target = $region44
        $region43: #{tpu_custom_call.1} parent=39 // pred_region
          %274 = dma.done [#allocation5], 512
        $region44: #{tpu_custom_call.1} parent=39 // pred_fallthru
          _
        %s275 = sand.u32 %s21, 1
        %s276 = scalar_lea.sflag [#allocation8], %s275
        %s277 = sand.u32 %s67, 1
        %s278 = smul.addr %s277, 64
        %s279 = scalar_lea.vmem [#allocation7], %s278
        // Predicated region
        $region45: #{tpu_custom_call.1} parent=39 // pred_check
          %p280 = pneg %p80
        $region46: #{tpu_custom_call.1} parent=39 // pred_check_branch
          %282 = sbr.rel (%p280) target = $region48
        $region47: #{tpu_custom_call.1} parent=39 // pred_region
          %283 = dma.done %s276, 1024
        $region48: #{tpu_custom_call.1} parent=39 // pred_fallthru
          _
        %s284 = sand.u32 %s21, 1
        %s285 = scalar_lea.sflag [#allocation8], %s284
        %s286 = sand.u32 %s119, 1
        %s287 = smul.addr %s286, 64
        %s288 = scalar_lea.vmem [#allocation9], %s287
        // Predicated region
        $region49: #{tpu_custom_call.1} parent=39 // pred_check
          %p289 = pneg %p132
        $region50: #{tpu_custom_call.1} parent=39 // pred_check_branch
          %291 = sbr.rel (%p289) target = $region52
        $region51: #{tpu_custom_call.1} parent=39 // pred_region
          %292 = dma.done %s285, 1024
        $region52: #{tpu_custom_call.1} parent=39 // pred_fallthru
          _
        %p293 = pneg %p54
        %p294 = pneg %p51
        %s295 = sand.u32 %s21, 1
        %s296 = scalar_lea.sflag [#allocation8], %s295
        %s297 = sand.u32 %s67, 1
        %s298 = smul.addr %s297, 64
        %s299 = scalar_lea.vmem [#allocation7], %s298
        %p300 = pneg %p80
        %p301 = pneg %p77
        %p302 = scmp.lt.s32.totalorder %s26, 1
        %s303 = scalar_select %p302, %s26, 1
        %s304 = scalar_lea.vmem %s2, %s303
        %p305 = pneg %p106
        %p306 = pneg %p103
        %s307 = sand.u32 %s21, 1
        %s308 = scalar_lea.sflag [#allocation8], %s307
        %s309 = sand.u32 %s119, 1
        %s310 = smul.addr %s309, 64
        %s311 = scalar_lea.vmem [#allocation9], %s310
        %p312 = pneg %p132
        %p313 = pneg %p129
        %p314 = pneg %p153
        %p315 = pneg %p150
        %p316 = pneg %p179
        %p317 = pneg %p176
        %s318 = smul.u32 4, %s25
        %p319 = scmp.lt.s32.totalorder %s26, 1
        %s320 = scalar_select %p319, %s26, 1
        %s321 = scalar_lea.vmem %s2, %s320
        %s322 = smul.u32 16, %s26
        %s323 = smul.u32 4, %s25
        %p325 = scmp.eq.s32.totalorder %s26, 0
        // Predicated region
        $region53: #{tpu_custom_call.1} parent=39 // pred_check
          %p326 = pneg %p325
        $region54: #{tpu_custom_call.1} parent=39 // pred_check_branch
          %328 = sbr.rel (%p326) target = $region56
        $region55: #{tpu_custom_call.1} parent=39 // pred_region
          %v329 = vld [vmem:[#allocation4] sm:$0xff]
          %v330 = vld [vmem:[#allocation4 + $0x8] sm:$0xff]
          %v331 = vld [vmem:[#allocation4 + $0x10] sm:$0xff]
          %v332 = vld [vmem:[#allocation4 + $0x18] sm:$0xff]
          %v333 = vmul.f32 %v329, 0.5
          %v334 = vmul.f32 %v330, 0.5
          %v335 = vmul.f32 %v331, 0.5
          %v336 = vmul.f32 %v332, 0.5
          %v337 = vmul.f32 %v329, 0.044715
          %v338 = vmul.f32 %v330, 0.044715
          %v339 = vmul.f32 %v331, 0.044715
          %v340 = vmul.f32 %v332, 0.044715
          %v341 = vmul.f32 %v337, %v329
          %v342 = vmul.f32 %v338, %v330
          %v343 = vmul.f32 %v339, %v331
          %v344 = vmul.f32 %v340, %v332
          %v345 = vmul.f32 %v341, %v329
          %v346 = vmul.f32 %v342, %v330
          %v347 = vmul.f32 %v343, %v331
          %v348 = vmul.f32 %v344, %v332
          %v349 = vadd.f32 %v329, %v345
          %v350 = vadd.f32 %v330, %v346
          %v351 = vadd.f32 %v331, %v347
          %v352 = vadd.f32 %v332, %v348
          %v353 = vmul.f32 %v349, 0.7978846
          %v354 = vmul.f32 %v350, 0.7978846
          %v355 = vmul.f32 %v351, 0.7978846
          %v356 = vmul.f32 %v352, 0.7978846
          %v357 = vtanh.pop %v353
          %v358 = vtanh.pop %v354
          %v359 = vtanh.pop %v355
          %v360 = vtanh.pop %v356
          %v361 = vadd.f32 %v357, 1.0
          %v362 = vadd.f32 %v358, 1.0
          %v363 = vadd.f32 %v359, 1.0
          %v364 = vadd.f32 %v360, 1.0
          %v365 = vmul.f32 %v333, %v361
          %v366 = vmul.f32 %v334, %v362
          %v367 = vmul.f32 %v335, %v363
          %v368 = vmul.f32 %v336, %v364
          %v369 = vpack.c.bf16 %v366, %v365
          %v370 = vpack.c.bf16 %v368, %v367
          %v373 = vunpack.c.l.b16 %v369
          %v374 = vunpack.c.h.b16 %v369
          %v375 = vunpack.c.l.b16 %v370
          %v376 = vunpack.c.h.b16 %v370
          %v377 = vpack.c.b16 %v373, %v373
          %v378 = vpack.c.b16 %v374, %v374
          %v379 = vpack.c.b16 %v375, %v375
          %v380 = vpack.c.b16 %v376, %v376
          %385 = vst [vmem:[#allocation2] sm:$0xf] %v377
          %386 = vst [vmem:[#allocation2 + $0x4] sm:$0xf] %v378
          %387 = vst [vmem:[#allocation2 + $0x8] sm:$0xf] %v379
          %388 = vst [vmem:[#allocation2 + $0xc] sm:$0xf] %v380
          %389 = vst [vmem:[#allocation3] sm:$0xff] 0.0
          %390 = vst [vmem:[#allocation3 + $0x8] sm:$0xff] 0.0
          %391 = vst [vmem:[#allocation3 + $0x10] sm:$0xff] 0.0
          %392 = vst [vmem:[#allocation3 + $0x18] sm:$0xff] 0.0
        $region56: #{tpu_custom_call.1} parent=39 // pred_fallthru
          _
        %v393 = vld [vmem:[#allocation2] sm:$0xf]
        %v394 = vld [vmem:[#allocation2 + $0x4] sm:$0xf]
        %v395 = vld [vmem:[#allocation2 + $0x8] sm:$0xf]
        %v396 = vld [vmem:[#allocation2 + $0xc] sm:$0xf]
        %v397 = vld [vmem:[%s279] sm:$0xf]
        %v398 = vld [vmem:[%s279 + $0x4] sm:$0xf]
        %v399 = vld [vmem:[%s279 + $0x8] sm:$0xf]
        %v400 = vld [vmem:[%s279 + $0xc] sm:$0xf]
        %v401 = vld [vmem:[%s279 + $0x10] sm:$0xf]
        %v402 = vld [vmem:[%s279 + $0x14] sm:$0xf]
        %v403 = vld [vmem:[%s279 + $0x18] sm:$0xf]
        %v404 = vld [vmem:[%s279 + $0x1c] sm:$0xf]
        %v405 = vld [vmem:[%s279 + $0x20] sm:$0xf]
        %v406 = vld [vmem:[%s279 + $0x24] sm:$0xf]
        %v407 = vld [vmem:[%s279 + $0x28] sm:$0xf]
        %v408 = vld [vmem:[%s279 + $0x2c] sm:$0xf]
        %v409 = vld [vmem:[%s279 + $0x30] sm:$0xf]
        %v410 = vld [vmem:[%s279 + $0x34] sm:$0xf]
        %v411 = vld [vmem:[%s279 + $0x38] sm:$0xf]
        %v412 = vld [vmem:[%s279 + $0x3c] sm:$0xf]
        %v413 = vld [vmem:[%s321] sm:$0x1]
        %v415 = vlaneseq
        %v416 = vshrl.u32 %v415, 7
        %v417 = vsub.s32 0, %v416
        %v418 = vrot.slane %v413, %v417
        %v424 = vunpack.c.l.b16 %v393
        %v425 = vunpack.c.l.b16 %v394
        %v426 = vunpack.c.l.b16 %v395
        %v427 = vunpack.c.l.b16 %v396
        %v428 = vpack.c.b16 %v425, %v424
        %v429 = vpack.c.b16 %v427, %v426
        %v448 = vunpack.c.l.b16 %v397
        %v449 = vunpack.c.l.b16 %v398
        %v450 = vunpack.c.l.b16 %v399
        %v451 = vunpack.c.l.b16 %v400
        %v452 = vunpack.c.l.b16 %v401
        %v453 = vunpack.c.l.b16 %v402
        %v454 = vunpack.c.l.b16 %v403
        %v455 = vunpack.c.l.b16 %v404
        %v456 = vunpack.c.l.b16 %v405
        %v457 = vunpack.c.l.b16 %v406
        %v458 = vunpack.c.l.b16 %v407
        %v459 = vunpack.c.l.b16 %v408
        %v460 = vunpack.c.l.b16 %v409
        %v461 = vunpack.c.l.b16 %v410
        %v462 = vunpack.c.l.b16 %v411
        %v463 = vunpack.c.l.b16 %v412
        %v464 = vpack.c.b16 %v449, %v448
        %v465 = vpack.c.b16 %v451, %v450
        %v466 = vpack.c.b16 %v453, %v452
        %v467 = vpack.c.b16 %v455, %v454
        %v468 = vpack.c.b16 %v457, %v456
        %v469 = vpack.c.b16 %v459, %v458
        %v470 = vpack.c.b16 %v461, %v460
        %v471 = vpack.c.b16 %v463, %v462
        %480 = vmatprep.subr.bf16.mxu0 0
        %481 = vmatpush1.bf16.msra.mxu0 %v471
        %482 = vmatprep.subr.bf16.mxu0 0
        %483 = vmatpush1.bf16.msra.mxu0 %v470
        %484 = vmatprep.subr.bf16.mxu0 0
        %485 = vmatpush1.bf16.msra.mxu0 %v469
        %486 = vmatprep.subr.bf16.mxu0 0
        %487 = vmatpush1.bf16.msra.mxu0 %v468
        %488 = vmatprep.subr.bf16.mxu0 0
        %489 = vmatpush1.bf16.msra.mxu0 %v467
        %490 = vmatprep.subr.bf16.mxu0 0
        %491 = vmatpush1.bf16.msra.mxu0 %v466
        %492 = vmatprep.subr.bf16.mxu0 0
        %493 = vmatpush1.bf16.msra.mxu0 %v465
        %494 = vmatprep.subr.bf16.mxu0 0
        %495 = vmatpush1.bf16.msra.mxu0 %v464
        %496 = vmatprep.subr.bf16.mxu0 0
        %497 = vmatpush2.bf16.msra.mxu0 0
        %498 = vmatprep.subr.bf16.mxu0 0
        %499 = vmatpush2.bf16.msra.mxu0 0
        %500 = vmatprep.subr.bf16.mxu0 0
        %501 = vmatpush2.bf16.msra.mxu0 0
        %502 = vmatprep.subr.bf16.mxu0 0
        %503 = vmatpush2.bf16.msra.mxu0 0
        %504 = vmatprep.subr.bf16.mxu0 0
        %505 = vmatpush2.bf16.msra.mxu0 0
        %506 = vmatprep.subr.bf16.mxu0 0
        %507 = vmatpush2.bf16.msra.mxu0 0
        %508 = vmatprep.subr.bf16.mxu0 0
        %509 = vmatpush2.bf16.msra.mxu0 0
        %510 = vmatprep.subr.bf16.mxu0 0
        %511 = vmatpush2.bf16.msra.mxu0 0
        %512 = vmatprep.mubr.bf16.mxu0 0
        %513 = vmatmul.mubr.bf16.gmra.mxu0 %v428
        %v514 = vpop.f32.mrf.mxu0
        %v515 = vadd.f32 %v418, %v514
        %v516 = vpop.f32.mrf.mxu0
        %v517 = vpop.f32.mrf.mxu0
        %v518 = vadd.f32 %v418, %v517
        %v519 = vpop.f32.mrf.mxu0
        %520 = vmatprep.mubr.bf16.mxu0 0
        %521 = vmatmul.mubr.bf16.gmra.mxu0 %v429
        %v522 = vpop.f32.mrf.mxu0
        %v523 = vadd.f32 %v418, %v522
        %v524 = vpop.f32.mrf.mxu0
        %v525 = vpop.f32.mrf.mxu0
        %v526 = vadd.f32 %v418, %v525
        %v527 = vpop.f32.mrf.mxu0
        %528 = vdwg.mxu0
        %v529 = vld [vmem:[#allocation3] sm:$0xff]
        %v530 = vld [vmem:[#allocation3 + $0x8] sm:$0xff]
        %v531 = vld [vmem:[#allocation3 + $0x10] sm:$0xff]
        %v532 = vld [vmem:[#allocation3 + $0x18] sm:$0xff]
        %v533 = vpack.c.bf16 %v518, %v515
        %v534 = vpack.c.bf16 %v526, %v523
        %v535 = vld [vmem:[%s288] sm:$0xf]
        %v536 = vld [vmem:[%s288 + $0x4] sm:$0xf]
        %v537 = vld [vmem:[%s288 + $0x8] sm:$0xf]
        %v538 = vld [vmem:[%s288 + $0xc] sm:$0xf]
        %v539 = vld [vmem:[%s288 + $0x10] sm:$0xf]
        %v540 = vld [vmem:[%s288 + $0x14] sm:$0xf]
        %v541 = vld [vmem:[%s288 + $0x18] sm:$0xf]
        %v542 = vld [vmem:[%s288 + $0x1c] sm:$0xf]
        %v543 = vld [vmem:[%s288 + $0x20] sm:$0xf]
        %v544 = vld [vmem:[%s288 + $0x24] sm:$0xf]
        %v545 = vld [vmem:[%s288 + $0x28] sm:$0xf]
        %v546 = vld [vmem:[%s288 + $0x2c] sm:$0xf]
        %v547 = vld [vmem:[%s288 + $0x30] sm:$0xf]
        %v548 = vld [vmem:[%s288 + $0x34] sm:$0xf]
        %v549 = vld [vmem:[%s288 + $0x38] sm:$0xf]
        %v550 = vld [vmem:[%s288 + $0x3c] sm:$0xf]
        %v567 = vunpack.c.l.b16 %v535
        %v568 = vunpack.c.l.b16 %v536
        %v569 = vunpack.c.l.b16 %v537
        %v570 = vunpack.c.l.b16 %v538
        %v571 = vunpack.c.l.b16 %v539
        %v572 = vunpack.c.l.b16 %v540
        %v573 = vunpack.c.l.b16 %v541
        %v574 = vunpack.c.l.b16 %v542
        %v575 = vunpack.c.l.b16 %v543
        %v576 = vunpack.c.l.b16 %v544
        %v577 = vunpack.c.l.b16 %v545
        %v578 = vunpack.c.l.b16 %v546
        %v579 = vunpack.c.l.b16 %v547
        %v580 = vunpack.c.l.b16 %v548
        %v581 = vunpack.c.l.b16 %v549
        %v582 = vunpack.c.l.b16 %v550
        %v583 = vpack.c.b16 %v568, %v567
        %v584 = vpack.c.b16 %v570, %v569
        %v585 = vpack.c.b16 %v572, %v571
        %v586 = vpack.c.b16 %v574, %v573
        %v587 = vpack.c.b16 %v576, %v575
        %v588 = vpack.c.b16 %v578, %v577
        %v589 = vpack.c.b16 %v580, %v579
        %v590 = vpack.c.b16 %v582, %v581
        %599 = vmatprep.subr.bf16.mxu0 0
        %600 = vmatpush1.bf16.msra.mxu0 %v590
        %601 = vmatprep.subr.bf16.mxu0 0
        %602 = vmatpush1.bf16.msra.mxu0 %v589
        %603 = vmatprep.subr.bf16.mxu0 0
        %604 = vmatpush1.bf16.msra.mxu0 %v588
        %605 = vmatprep.subr.bf16.mxu0 0
        %606 = vmatpush1.bf16.msra.mxu0 %v587
        %607 = vmatprep.subr.bf16.mxu0 0
        %608 = vmatpush1.bf16.msra.mxu0 %v586
        %609 = vmatprep.subr.bf16.mxu0 0
        %610 = vmatpush1.bf16.msra.mxu0 %v585
        %611 = vmatprep.subr.bf16.mxu0 0
        %612 = vmatpush1.bf16.msra.mxu0 %v584
        %613 = vmatprep.subr.bf16.mxu0 0
        %614 = vmatpush1.bf16.msra.mxu0 %v583
        %615 = vmatprep.subr.bf16.mxu0 0
        %616 = vmatpush2.bf16.msra.mxu0 0
        %617 = vmatprep.subr.bf16.mxu0 0
        %618 = vmatpush2.bf16.msra.mxu0 0
        %619 = vmatprep.subr.bf16.mxu0 0
        %620 = vmatpush2.bf16.msra.mxu0 0
        %621 = vmatprep.subr.bf16.mxu0 0
        %622 = vmatpush2.bf16.msra.mxu0 0
        %623 = vmatprep.subr.bf16.mxu0 0
        %624 = vmatpush2.bf16.msra.mxu0 0
        %625 = vmatprep.subr.bf16.mxu0 0
        %626 = vmatpush2.bf16.msra.mxu0 0
        %627 = vmatprep.subr.bf16.mxu0 0
        %628 = vmatpush2.bf16.msra.mxu0 0
        %629 = vmatprep.subr.bf16.mxu0 0
        %630 = vmatpush2.bf16.msra.mxu0 0
        %631 = vmatprep.mubr.bf16.mxu0 0
        %632 = vmatmul.mubr.bf16.gmra.mxu0 %v533
        %v633 = vpop.f32.mrf.mxu0
        %v634 = vadd.f32 0.0, %v633
        %v635 = vpop.f32.mrf.mxu0
        %v636 = vpop.f32.mrf.mxu0
        %v637 = vadd.f32 0.0, %v636
        %v638 = vpop.f32.mrf.mxu0
        %639 = vmatprep.mubr.bf16.mxu0 0
        %640 = vmatmul.mubr.bf16.gmra.mxu0 %v534
        %v641 = vpop.f32.mrf.mxu0
        %v642 = vadd.f32 0.0, %v641
        %v643 = vpop.f32.mrf.mxu0
        %v644 = vpop.f32.mrf.mxu0
        %v645 = vadd.f32 0.0, %v644
        %v646 = vpop.f32.mrf.mxu0
        %647 = vdwg.mxu0
        %v648 = vadd.f32 %v529, %v634
        %v649 = vadd.f32 %v530, %v637
        %v650 = vadd.f32 %v531, %v642
        %v651 = vadd.f32 %v532, %v645
        %652 = vst [vmem:[#allocation3] sm:$0xff] %v648
        %653 = vst [vmem:[#allocation3 + $0x8] sm:$0xff] %v649
        %654 = vst [vmem:[#allocation3 + $0x10] sm:$0xff] %v650
        %655 = vst [vmem:[#allocation3 + $0x18] sm:$0xff] %v651
        %p656 = scmp.eq.s32.totalorder %s26, 1
        // Predicated region
        $region57: #{tpu_custom_call.1} parent=39 // pred_check
          %p657 = pneg %p656
        $region58: #{tpu_custom_call.1} parent=39 // pred_check_branch
          %659 = sbr.rel (%p657) target = $region60
        $region59: #{tpu_custom_call.1} parent=39 // pred_region
          %v660 = vld [vmem:[#allocation3] sm:$0xff]
          %v661 = vld [vmem:[#allocation3 + $0x8] sm:$0xff]
          %v662 = vld [vmem:[#allocation3 + $0x10] sm:$0xff]
          %v663 = vld [vmem:[#allocation3 + $0x18] sm:$0xff]
          %v664 = vld [vmem:[%s4] sm:$0x1]
          %v666 = vlaneseq
          %v667 = vshrl.u32 %v666, 7
          %v668 = vsub.s32 0, %v667
          %v669 = vrot.slane %v664, %v668
          %v671 = vadd.f32 %v660, %v669
          %v672 = vadd.f32 %v661, %v669
          %v673 = vadd.f32 %v662, %v669
          %v674 = vadd.f32 %v663, %v669
          %675 = vst [vmem:[#allocation10] sm:$0xff] %v671
          %676 = vst [vmem:[#allocation10 + $0x8] sm:$0xff] %v672
          %677 = vst [vmem:[#allocation10 + $0x10] sm:$0xff] %v673
          %678 = vst [vmem:[#allocation10 + $0x18] sm:$0xff] %v674
        $region60: #{tpu_custom_call.1} parent=39 // pred_fallthru
          _
        // Predicated region
        $region61: #{tpu_custom_call.1} parent=39 // pred_check
          %p679 = pneg %p176
        $region62: #{tpu_custom_call.1} parent=39 // pred_check_branch
          %681 = sbr.rel (%p679) target = $region64
        $region63: #{tpu_custom_call.1} parent=39 // pred_region
          %s682 = smul.u32 4, %s25
          %s684 = ssub.s32 512, 512
          %685 = vsyncadd [#allocation6], %s684
          %s686 = smul.addr %s682, 128
          %s687 = scalar_lea.hbm %s5, %s686
          %s688 = sshll.u32 [#allocation10], 4
          %s689 = int_to_ptr.vmem [resolvable:$true] %s688
          %694 = dma.vmem_to_hbm [thread:$0]  %s689, 512, %s687, [#allocation6], 128, 128, 8
        $region64: #{tpu_custom_call.1} parent=39 // pred_fallthru
          _
        // Predicated region
        $region65: #{tpu_custom_call.1} parent=39 // pred_check
          %p695 = pneg %p176
        $region66: #{tpu_custom_call.1} parent=39 // pred_check_branch
          %697 = sbr.rel (%p695) target = $region68
        $region67: #{tpu_custom_call.1} parent=39 // pred_region
          %698 = dma.done [#allocation6], 512
        $region68: #{tpu_custom_call.1} parent=39 // pred_fallthru
          _
      $region40: #{tpu_custom_call.1} parent=5 // pred_fallthru
        _
      %p699 = scmp.le.s32.totalorder 2, %s16
      // Predicated region
      $region69: #{tpu_custom_call.1} parent=5 // pred_check
        %p700 = pneg %p699
      $region70: #{tpu_custom_call.1} parent=5 // pred_check_branch
        %702 = sbr.rel (%p700) target = $region72
      $region71: #{tpu_custom_call.1} parent=5 // pred_region
        %s703 = ssub.s32 %s16, 2
      $region72: #{tpu_custom_call.1} parent=5 // pred_fallthru
        _
    $region6: #{tpu_custom_call.1} parent=1 // loop_footer
      %s20 = sadd.s32 1, %s16
    $region7: #{tpu_custom_call.1} parent=1 // loop_footer_branch
      %15 = sbr.rel target = $region3
    $region8: #{tpu_custom_call.1} parent=1 // loop_exit
      _
    %704 = vsyncpa [#allocation5], 1
    %s705 = scalar_lea.sflag [#allocation5], 1
    %706 = vsyncpa %s705, 1
    %707 = vsyncpa [#allocation8], 1
    %s708 = scalar_lea.sflag [#allocation8], 1
    %709 = vsyncpa %s708, 1
    %710 = vsyncpa [#allocation6], 1
    %s711 = scalar_lea.sflag [#allocation6], 1
    %712 = vsyncpa %s711, 1

</llo_original>
